<compile_context>
chip_gen: v6e
topology: v6e:2x2x1
jax: 0.10.0
libtpu: 0.0.40
codegen_flags: <defaults>
</compile_context>

<pallas_src>
import functools
import math

import jax
import jax.numpy as jnp
from jax.experimental import pallas as pl
from jax.experimental.pallas import tpu as pltpu

_LANES = 128
_SUBLANES = 8


def _round_up(n, m):
    return ((n + m - 1) // m) * m


def _gelu_exact(x):
    # PyTorch nn.GELU() default: exact erf formulation.
    return 0.5 * x * (1.0 + jax.lax.erf(x * (1.0 / math.sqrt(2.0))))


def _device_kind():
    try:
        return jax.devices()[0].device_kind.lower()
    except Exception:
        return ""


def _is_multi_tensorcore_chip():
    # Only split the tile when "parallel" grid axes actually shard across
    # multiple TensorCores; on 1-TC parts a split is pure per-step overhead.
    kind = _device_kind()
    return any(tag in kind for tag in ("v7", "v4", "v5p"))


def _default_act_dtype(compute_dtype):
    if compute_dtype == jnp.float32:
        return jnp.float32
    # v5-generation VPU/EUP have no native bf16: keep GELU math in f32 there.
    if "v5" in _device_kind():
        return jnp.float32
    return jnp.bfloat16


def _vmem_bytes_estimate(tile, d_in, latent_dim, flat_params):
    # Double-buffered x / out tiles (kept in their narrow native dtypes/shapes).
    total = 2 * tile * d_in * 4 + 2 * tile * latent_dim * 4
    # Parameter blocks (double-buffered by default pipelining; tiny anyway).
    for p in flat_params:
        total += 2 * p.size * p.dtype.itemsize
    # In-kernel intermediates: f32 matmul results + activation copies.
    hidden = sum(int(p.shape[-1]) for p in flat_params[::2])
    total += 2 * tile * hidden * 4
    return total


def encoder_kernel(x_ref, *refs, compute_dtype, act_dtype, approx_gelu):
    o_ref = refs[-1]
    param_refs = refs[:-1]
    n_layers = len(param_refs) // 2

    if approx_gelu:
        act = lambda v: jax.nn.gelu(v, approximate=True)   # tanh -> EUP slot
    else:
        act = _gelu_exact                                   # PyTorch-exact erf

    h = x_ref[...].astype(compute_dtype)
    for layer in range(n_layers):
        w_ref = param_refs[2 * layer]
        b_ref = param_refs[2 * layer + 1]
        # MXU matmul (bf16 or f32 inputs) with f32 accumulation; bias add f32.
        z = jnp.dot(h, w_ref[...], preferred_element_type=jnp.float32) + b_ref[...]
        if layer < n_layers - 1:
            h = act(z.astype(act_dtype)).astype(compute_dtype)
        else:
            h = z                                           # final layer: no act
    o_ref[...] = h.astype(o_ref.dtype)


def prepare_encoder_params(params, use_bf16=True):
    """Hoisted one-time prep: cast W to the MXU compute dtype, b to (1, out) f32.

    params: list of (W, b) with W (in_features, out_features), b (1, out_features).
    """
    compute_dtype = jnp.bfloat16 if use_bf16 else jnp.float32
    flat = []
    for w, b in params:
        flat.append(jnp.asarray(w, compute_dtype))
        flat.append(jnp.asarray(b, jnp.float32).reshape(1, -1))
    return tuple(flat)


def encoder_forward(x, flat_params, *, batch_tile=1024, approx_gelu=True,
                    act_dtype=None):
    """x: (B, encoder_input_dim) float32. flat_params: output of prepare_encoder_params.
    Computes y = gelu(...gelu(x @ W1 + b1)...) @ W6 + b6 (PyTorch-equivalent)."""
    B, d_in = x.shape
    assert flat_params[0].shape[0] == d_in, "W1 in_features mismatch"
    latent_dim = int(flat_params[-1].shape[-1])
    compute_dtype = flat_params[0].dtype
    if act_dtype is None:
        act_dtype = _default_act_dtype(compute_dtype)

    # ---- batch tile: big (amortize ~0.35 us/step), 128-aligned for MXU M ----
    batch_tile = max(_round_up(int(batch_tile), _LANES), _LANES)
    if B <= batch_tile:
        tile = max(_round_up(B, _SUBLANES), _SUBLANES)   # single grid step
    else:
        tile = batch_tile
    # On 2-TC parts prefer >= 2 grid steps so the "parallel" axis shards cores.
    if (_is_multi_tensorcore_chip() and _round_up(B, tile) == tile
            and tile >= 2 * _LANES):
        tile = _round_up(tile // 2, _LANES)
    b_pad = _round_up(B, tile)
    grid = b_pad // tile

    if b_pad != B:
        x = jnp.pad(x, ((0, b_pad - B), (0, 0)))   # zero rows: numerically inert

    # x / out keep their narrow native last dims (full-dim blocks are legal),
    # avoiding the 8-10x padded HBM streams of the old version.
    in_specs = [pl.BlockSpec((tile, d_in), lambda i: (i, 0))]
    # Full-array blocks with constant index_map: weights/biases stay VMEM-resident.
    in_specs += [pl.BlockSpec(p.shape, lambda i: (0, 0)) for p in flat_params]
    out_spec = pl.BlockSpec((tile, latent_dim), lambda i: (i, 0))

    kernel = functools.partial(encoder_kernel,
                               compute_dtype=compute_dtype,
                               act_dtype=act_dtype,
                               approx_gelu=approx_gelu)

    compiler_kwargs = {"dimension_semantics": ("parallel",)}
    need = _vmem_bytes_estimate(tile, d_in, latent_dim, flat_params)
    request = int(need * 1.3)
    if request > 16 * 1024 * 1024:          # above the v5e scoped default
        compiler_kwargs["vmem_limit_bytes"] = min(request, 40 * 1024 * 1024)

    out = pl.pallas_call(
        kernel,
        out_shape=jax.ShapeDtypeStruct((b_pad, latent_dim), jnp.float32),
        grid_spec=pl.GridSpec(
            grid=(grid,),
            in_specs=in_specs,
            out_specs=out_spec,
        ),
        compiler_params=pltpu.CompilerParams(**compiler_kwargs),
    )(x, *flat_params)

    return out[:B]


def init_encoder_params(key, input_dim, class_dim, latent_dim):
    """Deterministic synthetic init matching the nn.Linear shapes of the module."""
    d_in = input_dim + class_dim
    dims = [d_in, 512, 256, 128, 64, 32, latent_dim]
    params = []
    for fan_in, fan_out in zip(dims[:-1], dims[1:]):
        key, kw, kb = jax.random.split(key, 3)
        bound = 1.0 / math.sqrt(fan_in)
        w = jax.random.uniform(kw, (fan_in, fan_out), jnp.float32, -bound, bound)
        b = jax.random.uniform(kb, (1, fan_out), jnp.float32, -bound, bound)
        params.append((w, b))
    return params


def encoder_reference(x, params):
    """Plain-JAX f32 reference of the same forward pass (for sanity checking)."""
    h = x
    for i, (w, b) in enumerate(params):
        h = h @ w + b
        if i < len(params) - 1:
            h = _gelu_exact(h)
    return h


if __name__ == "__main__":
    # Small shapes consistent with the module:
    #   input_dim=8, class_dim=4 -> encoder_input_dim=12, latent_dim=16, batch=16.
    input_dim, class_dim, latent_dim = 8, 4, 16
    batch = 16

    key = jax.random.PRNGKey(0)
    key, kx = jax.random.split(key)
    x = jax.random.normal(kx, (batch, input_dim + class_dim), jnp.float32)
    params = init_encoder_params(key, input_dim, class_dim, latent_dim)
    ref = encoder_reference(x, params)

    # Exact-parity path: f32 MXU inputs + erf GELU (matches PyTorch numerics).
    flat_f32 = prepare_encoder_params(params, use_bf16=False)
    out_exact = jax.block_until_ready(
        encoder_forward(x, flat_f32, approx_gelu=False))
    assert out_exact.shape == (batch, latent_dim)
    assert jnp.allclose(out_exact, ref, atol=1e-4, rtol=1e-4), "f32 path mismatch"

    # Production fast path: bf16 MXU inputs, f32 accumulation, tanh GELU (EUP).
    flat_bf16 = prepare_encoder_params(params, use_bf16=True)
    out_fast = jax.block_until_ready(encoder_forward(x, flat_bf16))
    assert out_fast.shape == (batch, latent_dim)
    assert bool(jnp.all(jnp.isfinite(out_fast)))
    assert jnp.allclose(out_fast, ref, atol=1e-1, rtol=1e-1), "bf16 path mismatch"

    print("KERNEL_OK")
</pallas_src>

<mosaic_0001>
module attributes {stable_mosaic.version = 11 : i64} {
  func.func @encoder_kernel(%arg0: i32, %arg1: memref<16x12xf32, #tpu.memory_space<vmem>>, %arg2: memref<12x512xf32, #tpu.memory_space<vmem>>, %arg3: memref<1x512xf32, #tpu.memory_space<vmem>>, %arg4: memref<512x256xf32, #tpu.memory_space<vmem>>, %arg5: memref<1x256xf32, #tpu.memory_space<vmem>>, %arg6: memref<256x128xf32, #tpu.memory_space<vmem>>, %arg7: memref<1x128xf32, #tpu.memory_space<vmem>>, %arg8: memref<128x64xf32, #tpu.memory_space<vmem>>, %arg9: memref<1x64xf32, #tpu.memory_space<vmem>>, %arg10: memref<64x32xf32, #tpu.memory_space<vmem>>, %arg11: memref<1x32xf32, #tpu.memory_space<vmem>>, %arg12: memref<32x16xf32, #tpu.memory_space<vmem>>, %arg13: memref<1x16xf32, #tpu.memory_space<vmem>>, %arg14: memref<16x16xf32, #tpu.memory_space<vmem>>) attributes {dimension_semantics = [#tpu.dimension_semantics<parallel>], iteration_bounds = array<i64: 1>, scalar_prefetch = 0 : i64, scratch_operands = 0 : i64, tpu.core_type = #tpu.core_type<tc>, window_params = [{transform_indices = @transform_0, window_bounds = array<i64: 16, 12>}, {pipeline_mode = #tpu.pipeline_mode<synchronous>, transform_indices = @transform_1, window_bounds = array<i64: 12, 512>}, {pipeline_mode = #tpu.pipeline_mode<synchronous>, transform_indices = @transform_2, window_bounds = array<i64: 1, 512>}, {pipeline_mode = #tpu.pipeline_mode<synchronous>, transform_indices = @transform_3, window_bounds = array<i64: 512, 256>}, {pipeline_mode = #tpu.pipeline_mode<synchronous>, transform_indices = @transform_4, window_bounds = array<i64: 1, 256>}, {pipeline_mode = #tpu.pipeline_mode<synchronous>, transform_indices = @transform_5, window_bounds = array<i64: 256, 128>}, {pipeline_mode = #tpu.pipeline_mode<synchronous>, transform_indices = @transform_6, window_bounds = array<i64: 1, 128>}, {pipeline_mode = #tpu.pipeline_mode<synchronous>, transform_indices = @transform_7, window_bounds = array<i64: 128, 64>}, {pipeline_mode = #tpu.pipeline_mode<synchronous>, transform_indices = @transform_8, window_bounds = array<i64: 1, 64>}, {pipeline_mode = #tpu.pipeline_mode<synchronous>, transform_indices = @transform_9, window_bounds = array<i64: 64, 32>}, {pipeline_mode = #tpu.pipeline_mode<synchronous>, transform_indices = @transform_10, window_bounds = array<i64: 1, 32>}, {pipeline_mode = #tpu.pipeline_mode<synchronous>, transform_indices = @transform_11, window_bounds = array<i64: 32, 16>}, {pipeline_mode = #tpu.pipeline_mode<synchronous>, transform_indices = @transform_12, window_bounds = array<i64: 1, 16>}, {transform_indices = @transform_13, window_bounds = array<i64: 16, 16>}]} {
    %c0 = arith.constant 0 : index
    %c0_0 = arith.constant 0 : index
    %0 = vector.load %arg1[%c0, %c0_0] : memref<16x12xf32, #tpu.memory_space<vmem>>, vector<16x12xf32>
    %c0_1 = arith.constant 0 : index
    %c0_2 = arith.constant 0 : index
    %1 = vector.load %arg2[%c0_1, %c0_2] : memref<12x512xf32, #tpu.memory_space<vmem>>, vector<12x512xf32>
    %cst = arith.constant dense<0.000000e+00> : vector<16x512xf32>
    %2 = tpu.matmul %0, %1, %cst {dimension_numbers = #tpu.dot_dimension_numbers<[1], [0], [0], [1], [0, 0, 1, 1], [], []>} : vector<16x12xf32>, vector<12x512xf32>, vector<16x512xf32> -> vector<16x512xf32>
    %c0_3 = arith.constant 0 : index
    %c0_4 = arith.constant 0 : index
    %3 = vector.load %arg3[%c0_3, %c0_4] : memref<1x512xf32, #tpu.memory_space<vmem>>, vector<1x512xf32>
    %4 = vector.broadcast %3 : vector<1x512xf32> to vector<16x512xf32>
    %5 = arith.addf %2, %4 : vector<16x512xf32>
    %cst_5 = arith.constant 5.000000e-01 : f32
    %6 = vector.broadcast %cst_5 : f32 to vector<16x512xf32>
    %7 = arith.mulf %6, %5 : vector<16x512xf32>
    %cst_6 = arith.constant 0.707106769 : f32
    %8 = vector.broadcast %cst_6 : f32 to vector<16x512xf32>
    %9 = arith.mulf %5, %8 : vector<16x512xf32>
    %10 = math.erf %9 : vector<16x512xf32>
    %cst_7 = arith.constant 1.000000e+00 : f32
    %11 = vector.broadcast %cst_7 : f32 to vector<16x512xf32>
    %12 = arith.addf %11, %10 : vector<16x512xf32>
    %13 = arith.mulf %7, %12 : vector<16x512xf32>
    %c0_8 = arith.constant 0 : index
    %c0_9 = arith.constant 0 : index
    %14 = vector.load %arg4[%c0_8, %c0_9] : memref<512x256xf32, #tpu.memory_space<vmem>>, vector<512x256xf32>
    %cst_10 = arith.constant dense<0.000000e+00> : vector<16x256xf32>
    %15 = tpu.matmul %13, %14, %cst_10 {dimension_numbers = #tpu.dot_dimension_numbers<[1], [0], [0], [1], [0, 0, 1, 1], [], []>} : vector<16x512xf32>, vector<512x256xf32>, vector<16x256xf32> -> vector<16x256xf32>
    %c0_11 = arith.constant 0 : index
    %c0_12 = arith.constant 0 : index
    %16 = vector.load %arg5[%c0_11, %c0_12] : memref<1x256xf32, #tpu.memory_space<vmem>>, vector<1x256xf32>
    %17 = vector.broadcast %16 : vector<1x256xf32> to vector<16x256xf32>
    %18 = arith.addf %15, %17 : vector<16x256xf32>
    %cst_13 = arith.constant 5.000000e-01 : f32
    %19 = vector.broadcast %cst_13 : f32 to vector<16x256xf32>
    %20 = arith.mulf %19, %18 : vector<16x256xf32>
    %cst_14 = arith.constant 0.707106769 : f32
    %21 = vector.broadcast %cst_14 : f32 to vector<16x256xf32>
    %22 = arith.mulf %18, %21 : vector<16x256xf32>
    %23 = math.erf %22 : vector<16x256xf32>
    %cst_15 = arith.constant 1.000000e+00 : f32
    %24 = vector.broadcast %cst_15 : f32 to vector<16x256xf32>
    %25 = arith.addf %24, %23 : vector<16x256xf32>
    %26 = arith.mulf %20, %25 : vector<16x256xf32>
    %c0_16 = arith.constant 0 : index
    %c0_17 = arith.constant 0 : index
    %27 = vector.load %arg6[%c0_16, %c0_17] : memref<256x128xf32, #tpu.memory_space<vmem>>, vector<256x128xf32>
    %cst_18 = arith.constant dense<0.000000e+00> : vector<16x128xf32>
    %28 = tpu.matmul %26, %27, %cst_18 {dimension_numbers = #tpu.dot_dimension_numbers<[1], [0], [0], [1], [0, 0, 1, 1], [], []>} : vector<16x256xf32>, vector<256x128xf32>, vector<16x128xf32> -> vector<16x128xf32>
    %c0_19 = arith.constant 0 : index
    %c0_20 = arith.constant 0 : index
    %29 = vector.load %arg7[%c0_19, %c0_20] : memref<1x128xf32, #tpu.memory_space<vmem>>, vector<1x128xf32>
    %30 = vector.broadcast %29 : vector<1x128xf32> to vector<16x128xf32>
    %31 = arith.addf %28, %30 : vector<16x128xf32>
    %cst_21 = arith.constant 5.000000e-01 : f32
    %32 = vector.broadcast %cst_21 : f32 to vector<16x128xf32>
    %33 = arith.mulf %32, %31 : vector<16x128xf32>
    %cst_22 = arith.constant 0.707106769 : f32
    %34 = vector.broadcast %cst_22 : f32 to vector<16x128xf32>
    %35 = arith.mulf %31, %34 : vector<16x128xf32>
    %36 = math.erf %35 : vector<16x128xf32>
    %cst_23 = arith.constant 1.000000e+00 : f32
    %37 = vector.broadcast %cst_23 : f32 to vector<16x128xf32>
    %38 = arith.addf %37, %36 : vector<16x128xf32>
    %39 = arith.mulf %33, %38 : vector<16x128xf32>
    %c0_24 = arith.constant 0 : index
    %c0_25 = arith.constant 0 : index
    %40 = vector.load %arg8[%c0_24, %c0_25] : memref<128x64xf32, #tpu.memory_space<vmem>>, vector<128x64xf32>
    %cst_26 = arith.constant dense<0.000000e+00> : vector<16x64xf32>
    %41 = tpu.matmul %39, %40, %cst_26 {dimension_numbers = #tpu.dot_dimension_numbers<[1], [0], [0], [1], [0, 0, 1, 1], [], []>} : vector<16x128xf32>, vector<128x64xf32>, vector<16x64xf32> -> vector<16x64xf32>
    %c0_27 = arith.constant 0 : index
    %c0_28 = arith.constant 0 : index
    %42 = vector.load %arg9[%c0_27, %c0_28] : memref<1x64xf32, #tpu.memory_space<vmem>>, vector<1x64xf32>
    %43 = vector.broadcast %42 : vector<1x64xf32> to vector<16x64xf32>
    %44 = arith.addf %41, %43 : vector<16x64xf32>
    %cst_29 = arith.constant 5.000000e-01 : f32
    %45 = vector.broadcast %cst_29 : f32 to vector<16x64xf32>
    %46 = arith.mulf %45, %44 : vector<16x64xf32>
    %cst_30 = arith.constant 0.707106769 : f32
    %47 = vector.broadcast %cst_30 : f32 to vector<16x64xf32>
    %48 = arith.mulf %44, %47 : vector<16x64xf32>
    %49 = math.erf %48 : vector<16x64xf32>
    %cst_31 = arith.constant 1.000000e+00 : f32
    %50 = vector.broadcast %cst_31 : f32 to vector<16x64xf32>
    %51 = arith.addf %50, %49 : vector<16x64xf32>
    %52 = arith.mulf %46, %51 : vector<16x64xf32>
    %c0_32 = arith.constant 0 : index
    %c0_33 = arith.constant 0 : index
    %53 = vector.load %arg10[%c0_32, %c0_33] : memref<64x32xf32, #tpu.memory_space<vmem>>, vector<64x32xf32>
    %cst_34 = arith.constant dense<0.000000e+00> : vector<16x32xf32>
    %54 = tpu.matmul %52, %53, %cst_34 {dimension_numbers = #tpu.dot_dimension_numbers<[1], [0], [0], [1], [0, 0, 1, 1], [], []>} : vector<16x64xf32>, vector<64x32xf32>, vector<16x32xf32> -> vector<16x32xf32>
    %c0_35 = arith.constant 0 : index
    %c0_36 = arith.constant 0 : index
    %55 = vector.load %arg11[%c0_35, %c0_36] : memref<1x32xf32, #tpu.memory_space<vmem>>, vector<1x32xf32>
    %56 = vector.broadcast %55 : vector<1x32xf32> to vector<16x32xf32>
    %57 = arith.addf %54, %56 : vector<16x32xf32>
    %cst_37 = arith.constant 5.000000e-01 : f32
    %58 = vector.broadcast %cst_37 : f32 to vector<16x32xf32>
    %59 = arith.mulf %58, %57 : vector<16x32xf32>
    %cst_38 = arith.constant 0.707106769 : f32
    %60 = vector.broadcast %cst_38 : f32 to vector<16x32xf32>
    %61 = arith.mulf %57, %60 : vector<16x32xf32>
    %62 = math.erf %61 : vector<16x32xf32>
    %cst_39 = arith.constant 1.000000e+00 : f32
    %63 = vector.broadcast %cst_39 : f32 to vector<16x32xf32>
    %64 = arith.addf %63, %62 : vector<16x32xf32>
    %65 = arith.mulf %59, %64 : vector<16x32xf32>
    %c0_40 = arith.constant 0 : index
    %c0_41 = arith.constant 0 : index
    %66 = vector.load %arg12[%c0_40, %c0_41] : memref<32x16xf32, #tpu.memory_space<vmem>>, vector<32x16xf32>
    %cst_42 = arith.constant dense<0.000000e+00> : vector<16x16xf32>
    %67 = tpu.matmul %65, %66, %cst_42 {dimension_numbers = #tpu.dot_dimension_numbers<[1], [0], [0], [1], [0, 0, 1, 1], [], []>} : vector<16x32xf32>, vector<32x16xf32>, vector<16x16xf32> -> vector<16x16xf32>
    %c0_43 = arith.constant 0 : index
    %c0_44 = arith.constant 0 : index
    %68 = vector.load %arg13[%c0_43, %c0_44] : memref<1x16xf32, #tpu.memory_space<vmem>>, vector<1x16xf32>
    %69 = vector.broadcast %68 : vector<1x16xf32> to vector<16x16xf32>
    %70 = arith.addf %67, %69 : vector<16x16xf32>
    %c0_45 = arith.constant 0 : index
    %c0_46 = arith.constant 0 : index
    %71 = vector.load %arg14[%c0_45, %c0_46] : memref<16x16xf32, #tpu.memory_space<vmem>>, vector<16x16xf32>
    tpu.vector_store %arg14[%c0_45, %c0_46], %70 {strides = array<i32>} : memref<16x16xf32, #tpu.memory_space<vmem>>, vector<16x16xf32>,
    return
  }
  func.func @transform_0(%arg0: i32) -> (i32, i32) {
    %c0_i32 = arith.constant 0 : i32
    %c0_i32_0 = arith.constant 0 : i32
    return %arg0, %c0_i32 : i32, i32
  }
  func.func @transform_1(%arg0: i32) -> (i32, i32) {
    %c0_i32 = arith.constant 0 : i32
    %c0_i32_0 = arith.constant 0 : i32
    %c0_i32_1 = arith.constant 0 : i32
    return %c0_i32, %c0_i32_0 : i32, i32
  }
  func.func @transform_2(%arg0: i32) -> (i32, i32) {
    %c0_i32 = arith.constant 0 : i32
    %c0_i32_0 = arith.constant 0 : i32
    %c0_i32_1 = arith.constant 0 : i32
    return %c0_i32, %c0_i32_0 : i32, i32
  }
  func.func @transform_3(%arg0: i32) -> (i32, i32) {
    %c0_i32 = arith.constant 0 : i32
    %c0_i32_0 = arith.constant 0 : i32
    %c0_i32_1 = arith.constant 0 : i32
    return %c0_i32, %c0_i32_0 : i32, i32
  }
  func.func @transform_4(%arg0: i32) -> (i32, i32) {
    %c0_i32 = arith.constant 0 : i32
    %c0_i32_0 = arith.constant 0 : i32
    %c0_i32_1 = arith.constant 0 : i32
    return %c0_i32, %c0_i32_0 : i32, i32
  }
  func.func @transform_5(%arg0: i32) -> (i32, i32) {
    %c0_i32 = arith.constant 0 : i32
    %c0_i32_0 = arith.constant 0 : i32
    %c0_i32_1 = arith.constant 0 : i32
    return %c0_i32, %c0_i32_0 : i32, i32
  }
  func.func @transform_6(%arg0: i32) -> (i32, i32) {
    %c0_i32 = arith.constant 0 : i32
    %c0_i32_0 = arith.constant 0 : i32
    %c0_i32_1 = arith.constant 0 : i32
    return %c0_i32, %c0_i32_0 : i32, i32
  }
  func.func @transform_7(%arg0: i32) -> (i32, i32) {
    %c0_i32 = arith.constant 0 : i32
    %c0_i32_0 = arith.constant 0 : i32
    %c0_i32_1 = arith.constant 0 : i32
    return %c0_i32, %c0_i32_0 : i32, i32
  }
  func.func @transform_8(%arg0: i32) -> (i32, i32) {
    %c0_i32 = arith.constant 0 : i32
    %c0_i32_0 = arith.constant 0 : i32
    %c0_i32_1 = arith.constant 0 : i32
    return %c0_i32, %c0_i32_0 : i32, i32
  }
  func.func @transform_9(%arg0: i32) -> (i32, i32) {
    %c0_i32 = arith.constant 0 : i32
    %c0_i32_0 = arith.constant 0 : i32
    %c0_i32_1 = arith.constant 0 : i32
    return %c0_i32, %c0_i32_0 : i32, i32
  }
  func.func @transform_10(%arg0: i32) -> (i32, i32) {
    %c0_i32 = arith.constant 0 : i32
    %c0_i32_0 = arith.constant 0 : i32
    %c0_i32_1 = arith.constant 0 : i32
    return %c0_i32, %c0_i32_0 : i32, i32
  }
  func.func @transform_11(%arg0: i32) -> (i32, i32) {
    %c0_i32 = arith.constant 0 : i32
    %c0_i32_0 = arith.constant 0 : i32
    %c0_i32_1 = arith.constant 0 : i32
    return %c0_i32, %c0_i32_0 : i32, i32
  }
  func.func @transform_12(%arg0: i32) -> (i32, i32) {
    %c0_i32 = arith.constant 0 : i32
    %c0_i32_0 = arith.constant 0 : i32
    %c0_i32_1 = arith.constant 0 : i32
    return %c0_i32, %c0_i32_0 : i32, i32
  }
  func.func @transform_13(%arg0: i32) -> (i32, i32) {
    %c0_i32 = arith.constant 0 : i32
    %c0_i32_0 = arith.constant 0 : i32
    return %arg0, %c0_i32 : i32, i32
  }
}

</mosaic_0001>

<llo_original>
// kernel: tpu_custom_call.1
$region0: #{tpu_custom_call.1}
  #allocation0 [shape = 'u32[]', space=smem, size = 0x4, offset = 0x4, fixed_abs, tag = 'smem constant byte address 0x4 - core index']
  #allocation1 [shape = 'u32[144,128]{1,0:T(1,128)}', space=vmem, size = 0x12000, scoped, tag = 'internal scratch']
  %s0 = inlined_call_operand.hbm [shape: f32[16,12], index: 0, kind: input, shape index: {}]
  %s1 = inlined_call_operand.hbm [shape: f32[12,512], index: 1, kind: input, shape index: {}]
  %s2 = inlined_call_operand.hbm [shape: f32[1,512], index: 2, kind: input, shape index: {}]
  %s3 = inlined_call_operand.hbm [shape: f32[512,256], index: 3, kind: input, shape index: {}]
  %s4 = inlined_call_operand.hbm [shape: f32[1,256], index: 4, kind: input, shape index: {}]
  %s5 = inlined_call_operand.vmem [shape: f32[256,128], index: 5, kind: input, shape index: {}]
  %s6 = inlined_call_operand.hbm [shape: f32[1,128], index: 6, kind: input, shape index: {}]
  %s7 = inlined_call_operand.vmem [shape: f32[128,64], index: 7, kind: input, shape index: {}]
  %s8 = inlined_call_operand.hbm [shape: f32[1,64], index: 8, kind: input, shape index: {}]
  %s9 = inlined_call_operand.vmem [shape: f32[64,32], index: 9, kind: input, shape index: {}]
  %s10 = inlined_call_operand.vmem [shape: f32[1,32], index: 10, kind: input, shape index: {}]
  %s11 = inlined_call_operand.vmem [shape: f32[32,16], index: 11, kind: input, shape index: {}]
  %s12 = inlined_call_operand.vmem [shape: f32[1,16], index: 12, kind: input, shape index: {}]
  %s13 = inlined_call_operand.hbm [shape: f32[16,16], index: 13, kind: output, shape index: {}]
  %s14 = sld [smem:[#allocation0]]
  $region90: #{tpu_custom_call.1} parent=0
    _
  %s16 = ssub.s32 1, %s14
  %s17 = scalar_select 0, %s16, %s14
  $region1: #{tpu_custom_call.1} parent=0
    #allocation2 [shape = 'u8[8192]{0}', space=vmem, size = 0x2000, scoped, tag = 'input window, operand 0, single buffered']
    #allocation3 [shape = 's32[1]{0}', space=sflag, size = 0x4, scoped, tag = 'scoped memory for tpu_custom_call.1']
    #allocation4 [shape = 's32[1]{0}', space=sflag, size = 0x4, scoped, tag = 'scoped memory for tpu_custom_call.1']
    #allocation5 [shape = 'u8[32768]{0}', space=vmem, size = 0x8000, scoped, tag = 'input window, operand 1, single buffered']
    #allocation6 [shape = 's32[1]{0}', space=sflag, size = 0x4, scoped, tag = 'scoped memory for tpu_custom_call.1']
    #allocation7 [shape = 'u8[2048]{0}', space=vmem, size = 0x800, scoped, tag = 'input window, operand 2, single buffered']
    #allocation8 [shape = 'u8[524288]{0}', space=vmem, size = 0x80000, scoped, tag = 'input window, operand 3, single buffered']
    #allocation9 [shape = 's32[1]{0}', space=sflag, size = 0x4, scoped, tag = 'scoped memory for tpu_custom_call.1']
    #allocation10 [shape = 'u8[1024]{0}', space=vmem, size = 0x400, scoped, tag = 'input window, operand 4, single buffered']
    #allocation11 [shape = 'u8[512]{0}', space=vmem, size = 0x400, scoped, tag = 'input window, operand 6, single buffered']
    #allocation12 [shape = 's32[1]{0}', space=sflag, size = 0x4, scoped, tag = 'scoped memory for tpu_custom_call.1']
    #allocation13 [shape = 'u8[512]{0}', space=vmem, size = 0x400, scoped, tag = 'input window, operand 8, single buffered']
    #allocation14 [shape = 'u8[8192]{0}', space=vmem, size = 0x2000, scoped, tag = 'output window, operand 0, single buffered']
    %18 = vsyncpa [#allocation3], 0
    %19 = vsyncpa [#allocation6], 0
    %20 = vsyncpa [#allocation9], 0
    %21 = vsyncpa [#allocation12], 0
    %22 = vsyncpa [#allocation4], 0
    // Predicated region
    $region2: #{tpu_custom_call.1} parent=1 // pred_check
      _
    $region3: #{tpu_custom_call.1} parent=1 // pred_check_branch
      %24 = sbr.rel (0) target = $region5
    $region4: #{tpu_custom_call.1} parent=1 // pred_region
      %s26 = ssub.s32 256, 256
      %27 = vsyncadd [#allocation3], %s26
      %s28 = sshll.u32 [#allocation2], 4
      %s29 = int_to_ptr.vmem [resolvable:$true] %s28
      %34 = dma.hbm_to_vmem [thread:$0]  %s0, 256, %s29, [#allocation3], 128, 128, 8
    $region5: #{tpu_custom_call.1} parent=1 // pred_fallthru
      _
    // Predicated region
    $region6: #{tpu_custom_call.1} parent=1 // pred_check
      _
    $region7: #{tpu_custom_call.1} parent=1 // pred_check_branch
      %36 = sbr.rel (0) target = $region9
    $region8: #{tpu_custom_call.1} parent=1 // pred_region
      %s38 = ssub.s32 1024, 1024
      %39 = vsyncadd [#allocation6], %s38
      %s40 = sshll.u32 [#allocation5], 4
      %s41 = int_to_ptr.vmem [resolvable:$true] %s40
      %46 = dma.hbm_to_vmem [thread:$0]  %s1, 1024, %s41, [#allocation6], 512, 512, 32
    $region9: #{tpu_custom_call.1} parent=1 // pred_fallthru
      _
    // Predicated region
    $region10: #{tpu_custom_call.1} parent=1 // pred_check
      _
    $region11: #{tpu_custom_call.1} parent=1 // pred_check_branch
      %48 = sbr.rel (0) target = $region13
    $region12: #{tpu_custom_call.1} parent=1 // pred_region
      %s50 = ssub.s32 64, 64
      %51 = vsyncadd [#allocation6], %s50
      %s53 = sshll.u32 [#allocation7], 4
      %s54 = int_to_ptr.vmem [resolvable:$true] %s53
      %56 = dma.hbm_to_vmem [thread:$0]  %s2, 64, %s54, [#allocation6]
    $region13: #{tpu_custom_call.1} parent=1 // pred_fallthru
      _
    // Predicated region
    $region14: #{tpu_custom_call.1} parent=1 // pred_check
      _
    $region15: #{tpu_custom_call.1} parent=1 // pred_check_branch
      %58 = sbr.rel (0) target = $region17
    $region16: #{tpu_custom_call.1} parent=1 // pred_region
      %s60 = ssub.s32 16384, 16384
      %61 = vsyncadd [#allocation9], %s60
      %s62 = sshll.u32 [#allocation8], 4
      %s63 = int_to_ptr.vmem [resolvable:$true] %s62
      %68 = dma.hbm_to_vmem [thread:$0]  %s3, 16384, %s63, [#allocation9], 256, 256, 16
    $region17: #{tpu_custom_call.1} parent=1 // pred_fallthru
      _
    // Predicated region
    $region18: #{tpu_custom_call.1} parent=1 // pred_check
      _
    $region19: #{tpu_custom_call.1} parent=1 // pred_check_branch
      %70 = sbr.rel (0) target = $region21
    $region20: #{tpu_custom_call.1} parent=1 // pred_region
      %s72 = ssub.s32 32, 32
      %73 = vsyncadd [#allocation9], %s72
      %s75 = sshll.u32 [#allocation10], 4
      %s76 = int_to_ptr.vmem [resolvable:$true] %s75
      %78 = dma.hbm_to_vmem [thread:$0]  %s4, 32, %s76, [#allocation9]
    $region21: #{tpu_custom_call.1} parent=1 // pred_fallthru
      _
    // Predicated region
    $region22: #{tpu_custom_call.1} parent=1 // pred_check
      _
    $region23: #{tpu_custom_call.1} parent=1 // pred_check_branch
      %80 = sbr.rel (0) target = $region25
    $region24: #{tpu_custom_call.1} parent=1 // pred_region
      _
    $region25: #{tpu_custom_call.1} parent=1 // pred_fallthru
      _
    // Predicated region
    $region26: #{tpu_custom_call.1} parent=1 // pred_check
      _
    $region27: #{tpu_custom_call.1} parent=1 // pred_check_branch
      %82 = sbr.rel (0) target = $region29
    $region28: #{tpu_custom_call.1} parent=1 // pred_region
      %s84 = ssub.s32 16, 16
      %85 = vsyncadd [#allocation12], %s84
      %s87 = sshll.u32 [#allocation11], 4
      %s88 = int_to_ptr.vmem [resolvable:$true] %s87
      %90 = dma.hbm_to_vmem [thread:$0]  %s6, 16, %s88, [#allocation12]
    $region29: #{tpu_custom_call.1} parent=1 // pred_fallthru
      _
    // Predicated region
    $region30: #{tpu_custom_call.1} parent=1 // pred_check
      _
    $region31: #{tpu_custom_call.1} parent=1 // pred_check_branch
      %92 = sbr.rel (0) target = $region33
    $region32: #{tpu_custom_call.1} parent=1 // pred_region
      _
    $region33: #{tpu_custom_call.1} parent=1 // pred_fallthru
      _
    // Predicated region
    $region34: #{tpu_custom_call.1} parent=1 // pred_check
      _
    $region35: #{tpu_custom_call.1} parent=1 // pred_check_branch
      %94 = sbr.rel (0) target = $region37
    $region36: #{tpu_custom_call.1} parent=1 // pred_region
      %s96 = ssub.s32 16, 16
      %97 = vsyncadd [#allocation12], %s96
      %s99 = sshll.u32 [#allocation13], 4
      %s100 = int_to_ptr.vmem [resolvable:$true] %s99
      %102 = dma.hbm_to_vmem [thread:$0]  %s8, 16, %s100, [#allocation12]
    $region37: #{tpu_custom_call.1} parent=1 // pred_fallthru
      _
    // Predicated region
    $region38: #{tpu_custom_call.1} parent=1 // pred_check
      _
    $region39: #{tpu_custom_call.1} parent=1 // pred_check_branch
      %104 = sbr.rel (0) target = $region41
    $region40: #{tpu_custom_call.1} parent=1 // pred_region
      _
    $region41: #{tpu_custom_call.1} parent=1 // pred_fallthru
      _
    // Predicated region
    $region42: #{tpu_custom_call.1} parent=1 // pred_check
      _
    $region43: #{tpu_custom_call.1} parent=1 // pred_check_branch
      %106 = sbr.rel (0) target = $region45
    $region44: #{tpu_custom_call.1} parent=1 // pred_region
      _
    $region45: #{tpu_custom_call.1} parent=1 // pred_fallthru
      _
    // Predicated region
    $region46: #{tpu_custom_call.1} parent=1 // pred_check
      _
    $region47: #{tpu_custom_call.1} parent=1 // pred_check_branch
      %108 = sbr.rel (0) target = $region49
    $region48: #{tpu_custom_call.1} parent=1 // pred_region
      _
    $region49: #{tpu_custom_call.1} parent=1 // pred_fallthru
      _
    // Predicated region
    $region50: #{tpu_custom_call.1} parent=1 // pred_check
      _
    $region51: #{tpu_custom_call.1} parent=1 // pred_check_branch
      %110 = sbr.rel (0) target = $region53
    $region52: #{tpu_custom_call.1} parent=1 // pred_region
      _
    $region53: #{tpu_custom_call.1} parent=1 // pred_fallthru
      _
    // Predicated region
    $region54: #{tpu_custom_call.1} parent=1 // pred_check
      _
    $region55: #{tpu_custom_call.1} parent=1 // pred_check_branch
      %112 = sbr.rel (0) target = $region57
    $region56: #{tpu_custom_call.1} parent=1 // pred_region
      %113 = dma.done [#allocation3], 256
    $region57: #{tpu_custom_call.1} parent=1 // pred_fallthru
      _
    // Predicated region
    $region58: #{tpu_custom_call.1} parent=1 // pred_check
      _
    $region59: #{tpu_custom_call.1} parent=1 // pred_check_branch
      %115 = sbr.rel (0) target = $region61
    $region60: #{tpu_custom_call.1} parent=1 // pred_region
      %116 = dma.done [#allocation6], 1024
    $region61: #{tpu_custom_call.1} parent=1 // pred_fallthru
      _
    // Predicated region
    $region62: #{tpu_custom_call.1} parent=1 // pred_check
      _
    $region63: #{tpu_custom_call.1} parent=1 // pred_check_branch
      %118 = sbr.rel (0) target = $region65
    $region64: #{tpu_custom_call.1} parent=1 // pred_region
      %119 = dma.done [#allocation6], 64
    $region65: #{tpu_custom_call.1} parent=1 // pred_fallthru
      _
    // Predicated region
    $region66: #{tpu_custom_call.1} parent=1 // pred_check
      _
    $region67: #{tpu_custom_call.1} parent=1 // pred_check_branch
      %121 = sbr.rel (0) target = $region69
    $region68: #{tpu_custom_call.1} parent=1 // pred_region
      %122 = dma.done [#allocation9], 16384
    $region69: #{tpu_custom_call.1} parent=1 // pred_fallthru
      _
    // Predicated region
    $region70: #{tpu_custom_call.1} parent=1 // pred_check
      _
    $region71: #{tpu_custom_call.1} parent=1 // pred_check_branch
      %124 = sbr.rel (0) target = $region73
    $region72: #{tpu_custom_call.1} parent=1 // pred_region
      %125 = dma.done [#allocation9], 32
    $region73: #{tpu_custom_call.1} parent=1 // pred_fallthru
      _
    // Predicated region
    $region74: #{tpu_custom_call.1} parent=1 // pred_check
      _
    $region75: #{tpu_custom_call.1} parent=1 // pred_check_branch
      %127 = sbr.rel (0) target = $region77
    $region76: #{tpu_custom_call.1} parent=1 // pred_region
      %128 = dma.done [#allocation12], 16
    $region77: #{tpu_custom_call.1} parent=1 // pred_fallthru
      _
    // Predicated region
    $region78: #{tpu_custom_call.1} parent=1 // pred_check
      _
    $region79: #{tpu_custom_call.1} parent=1 // pred_check_branch
      %130 = sbr.rel (0) target = $region81
    $region80: #{tpu_custom_call.1} parent=1 // pred_region
      %131 = dma.done [#allocation12], 16
    $region81: #{tpu_custom_call.1} parent=1 // pred_fallthru
      _
    %v132 = vld [vmem:[#allocation2] sm:$0xff]
    %v133 = vld [vmem:[#allocation2 + $0x8] sm:$0xff]
    %v134 = vld [vmem:[#allocation5] sm:$0xff]
    %v135 = vld [vmem:[#allocation5 + $0x8] sm:$0xff]
    %v136 = vld [vmem:[#allocation5 + $0x10] sm:$0xff]
    %v137 = vld [vmem:[#allocation5 + $0x18] sm:$0xff]
    %v138 = vld [vmem:[#allocation5 + $0x20] sm:$0xf]
    %v139 = vld [vmem:[#allocation5 + $0x28] sm:$0xf]
    %v140 = vld [vmem:[#allocation5 + $0x30] sm:$0xf]
    %v141 = vld [vmem:[#allocation5 + $0x38] sm:$0xf]
    %v142 = vld [vmem:[#allocation7] sm:$0xf]
    %v144 = vlaneseq
    %v145 = vshrl.u32 %v144, 7
    %v146 = vsub.s32 0, %v145
    %v147 = vrot.slane %v142, %v146
    %v148 = vlaneseq
    %v149 = vshrl.u32 %v148, 7
    %v150 = vsub.s32 1, %v149
    %v151 = vrot.slane %v142, %v150
    %v152 = vlaneseq
    %v153 = vshrl.u32 %v152, 7
    %v154 = vsub.s32 2, %v153
    %v155 = vrot.slane %v142, %v154
    %v156 = vlaneseq
    %v157 = vshrl.u32 %v156, 7
    %v158 = vsub.s32 3, %v157
    %v159 = vrot.slane %v142, %v158
    %vm164 = vcmask 97280
    %v166 = vsel %vm164, %v132, 0
    %v169 = vsel %vm164, %v133, 0
    %vm171 = vcmask 1043456
    %v173 = vsel %vm171, %v138, 0
    %v176 = vsel %vm171, %v139, 0
    %v179 = vsel %vm171, %v140, 0
    %v182 = vsel %vm171, %v141, 0
    %184 = vmatprep.subr.mxu0 0.0
    %185 = vmatpush1.msra.mxu0 0.0
    %186 = vmatprep.subr.mxu0 0.0
    %187 = vmatpush1.msra.mxu0 0.0
    %188 = vmatprep.subr.mxu0 0.0
    %189 = vmatpush1.msra.mxu0 0.0
    %190 = vmatprep.subr.mxu0 0.0
    %191 = vmatpush1.msra.mxu0 0.0
    %192 = vmatprep.subr.mxu0 0.0
    %193 = vmatpush1.msra.mxu0 0.0
    %194 = vmatprep.subr.mxu0 0.0
    %195 = vmatpush1.msra.mxu0 0.0
    %196 = vmatprep.subr.mxu0 0.0
    %197 = vmatpush1.msra.mxu0 0.0
    %198 = vmatprep.subr.mxu0 0.0
    %199 = vmatpush1.msra.mxu0 0.0
    %200 = vmatprep.subr.mxu0 0.0
    %201 = vmatpush1.msra.mxu0 0.0
    %202 = vmatprep.subr.mxu0 0.0
    %203 = vmatpush1.msra.mxu0 0.0
    %204 = vmatprep.subr.mxu0 0.0
    %205 = vmatpush1.msra.mxu0 0.0
    %206 = vmatprep.subr.mxu0 0.0
    %207 = vmatpush1.msra.mxu0 0.0
    %208 = vmatprep.subr.mxu0 0.0
    %209 = vmatpush1.msra.mxu0 0.0
    %210 = vmatprep.subr.mxu0 0.0
    %211 = vmatpush1.msra.mxu0 0.0
    %212 = vmatprep.subr.mxu0 %v176
    %213 = vmatpush1.msra.mxu0 %v173
    %214 = vmatprep.subr.mxu0 %v135
    %215 = vmatpush1.msra.mxu0 %v134
    %216 = vmatprep.subr.mxu0 0.0
    %217 = vmatpush2.msra.mxu0 0.0
    %218 = vmatprep.subr.mxu0 0.0
    %219 = vmatpush2.msra.mxu0 0.0
    %220 = vmatprep.subr.mxu0 0.0
    %221 = vmatpush2.msra.mxu0 0.0
    %222 = vmatprep.subr.mxu0 0.0
    %223 = vmatpush2.msra.mxu0 0.0
    %224 = vmatprep.subr.mxu0 0.0
    %225 = vmatpush2.msra.mxu0 0.0
    %226 = vmatprep.subr.mxu0 0.0
    %227 = vmatpush2.msra.mxu0 0.0
    %228 = vmatprep.subr.mxu0 0.0
    %229 = vmatpush2.msra.mxu0 0.0
    %230 = vmatprep.subr.mxu0 0.0
    %231 = vmatpush2.msra.mxu0 0.0
    %232 = vmatprep.subr.mxu0 0.0
    %233 = vmatpush2.msra.mxu0 0.0
    %234 = vmatprep.subr.mxu0 0.0
    %235 = vmatpush2.msra.mxu0 0.0
    %236 = vmatprep.subr.mxu0 0.0
    %237 = vmatpush2.msra.mxu0 0.0
    %238 = vmatprep.subr.mxu0 0.0
    %239 = vmatpush2.msra.mxu0 0.0
    %240 = vmatprep.subr.mxu0 0.0
    %241 = vmatpush2.msra.mxu0 0.0
    %242 = vmatprep.subr.mxu0 0.0
    %243 = vmatpush2.msra.mxu0 0.0
    %244 = vmatprep.subr.mxu0 0.0
    %245 = vmatpush2.msra.mxu0 0.0
    %246 = vmatprep.subr.mxu0 0.0
    %247 = vmatpush2.msra.mxu0 0.0
    %248 = vmatprep.mubr.f32.mxu0 0.0
    %249 = vmatmul.mubr.f32.gmra.mxu0 %v166
    %v250 = vpop.f32.mrf.mxu0
    %v251 = vadd.f32 %v147, %v250
    %v252 = vpop.f32.mrf.mxu0
    %v253 = vadd.f32 %v151, %v252
    %254 = vmatprep.mubr.f32.mxu0 0.0
    %255 = vmatmul.mubr.f32.gmra.mxu0 %v169
    %v256 = vpop.f32.mrf.mxu0
    %v257 = vadd.f32 %v147, %v256
    %v258 = vpop.f32.mrf.mxu0
    %v259 = vadd.f32 %v151, %v258
    %260 = vdwg.mxu0
    %261 = vmatprep.subr.mxu0 0.0
    %262 = vmatpush1.msra.mxu0 0.0
    %263 = vmatprep.subr.mxu0 0.0
    %264 = vmatpush1.msra.mxu0 0.0
    %265 = vmatprep.subr.mxu0 0.0
    %266 = vmatpush1.msra.mxu0 0.0
    %267 = vmatprep.subr.mxu0 0.0
    %268 = vmatpush1.msra.mxu0 0.0
    %269 = vmatprep.subr.mxu0 0.0
    %270 = vmatpush1.msra.mxu0 0.0
    %271 = vmatprep.subr.mxu0 0.0
    %272 = vmatpush1.msra.mxu0 0.0
    %273 = vmatprep.subr.mxu0 0.0
    %274 = vmatpush1.msra.mxu0 0.0
    %275 = vmatprep.subr.mxu0 0.0
    %276 = vmatpush1.msra.mxu0 0.0
    %277 = vmatprep.subr.mxu0 0.0
    %278 = vmatpush1.msra.mxu0 0.0
    %279 = vmatprep.subr.mxu0 0.0
    %280 = vmatpush1.msra.mxu0 0.0
    %281 = vmatprep.subr.mxu0 0.0
    %282 = vmatpush1.msra.mxu0 0.0
    %283 = vmatprep.subr.mxu0 0.0
    %284 = vmatpush1.msra.mxu0 0.0
    %285 = vmatprep.subr.mxu0 0.0
    %286 = vmatpush1.msra.mxu0 0.0
    %287 = vmatprep.subr.mxu0 0.0
    %288 = vmatpush1.msra.mxu0 0.0
    %289 = vmatprep.subr.mxu0 %v182
    %290 = vmatpush1.msra.mxu0 %v179
    %291 = vmatprep.subr.mxu0 %v137
    %292 = vmatpush1.msra.mxu0 %v136
    %293 = vmatprep.subr.mxu0 0.0
    %294 = vmatpush2.msra.mxu0 0.0
    %295 = vmatprep.subr.mxu0 0.0
    %296 = vmatpush2.msra.mxu0 0.0
    %297 = vmatprep.subr.mxu0 0.0
    %298 = vmatpush2.msra.mxu0 0.0
    %299 = vmatprep.subr.mxu0 0.0
    %300 = vmatpush2.msra.mxu0 0.0
    %301 = vmatprep.subr.mxu0 0.0
    %302 = vmatpush2.msra.mxu0 0.0
    %303 = vmatprep.subr.mxu0 0.0
    %304 = vmatpush2.msra.mxu0 0.0
    %305 = vmatprep.subr.mxu0 0.0
    %306 = vmatpush2.msra.mxu0 0.0
    %307 = vmatprep.subr.mxu0 0.0
    %308 = vmatpush2.msra.mxu0 0.0
    %309 = vmatprep.subr.mxu0 0.0
    %310 = vmatpush2.msra.mxu0 0.0
    %311 = vmatprep.subr.mxu0 0.0
    %312 = vmatpush2.msra.mxu0 0.0
    %313 = vmatprep.subr.mxu0 0.0
    %314 = vmatpush2.msra.mxu0 0.0
    %315 = vmatprep.subr.mxu0 0.0
    %316 = vmatpush2.msra.mxu0 0.0
    %317 = vmatprep.subr.mxu0 0.0
    %318 = vmatpush2.msra.mxu0 0.0
    %319 = vmatprep.subr.mxu0 0.0
    %320 = vmatpush2.msra.mxu0 0.0
    %321 = vmatprep.subr.mxu0 0.0
    %322 = vmatpush2.msra.mxu0 0.0
    %323 = vmatprep.subr.mxu0 0.0
    %324 = vmatpush2.msra.mxu0 0.0
    %325 = vmatprep.mubr.f32.mxu0 0.0
    %326 = vmatmul.mubr.f32.gmra.mxu0 %v166
    %v327 = vpop.f32.mrf.mxu0
    %v328 = vadd.f32 %v155, %v327
    %v329 = vpop.f32.mrf.mxu0
    %v330 = vadd.f32 %v159, %v329
    %331 = vmatprep.mubr.f32.mxu0 0.0
    %332 = vmatmul.mubr.f32.gmra.mxu0 %v169
    %v333 = vpop.f32.mrf.mxu0
    %v334 = vadd.f32 %v155, %v333
    %v335 = vpop.f32.mrf.mxu0
    %v336 = vadd.f32 %v159, %v335
    %337 = vdwg.mxu0
    %v338 = vmul.f32 %v251, 0.5
    %v339 = vmul.f32 %v253, 0.5
    %v340 = vmul.f32 %v328, 0.5
    %v341 = vmul.f32 %v330, 0.5
    %v342 = vmul.f32 %v257, 0.5
    %v343 = vmul.f32 %v259, 0.5
    %v344 = vmul.f32 %v334, 0.5
    %v345 = vmul.f32 %v336, 0.5
    %v346 = vmul.f32 %v251, 0.70710677
    %v347 = vmul.f32 %v253, 0.70710677
    %v348 = vmul.f32 %v328, 0.70710677
    %v349 = vmul.f32 %v330, 0.70710677
    %v350 = vmul.f32 %v257, 0.70710677
    %v351 = vmul.f32 %v259, 0.70710677
    %v352 = vmul.f32 %v334, 0.70710677
    %v353 = vmul.f32 %v336, 0.70710677
    %v354 = verf.f32.pop %v346
    %v355 = verf.f32.pop %v347
    %v356 = verf.f32.pop %v348
    %v357 = verf.f32.pop %v349
    %v358 = verf.f32.pop %v350
    %v359 = verf.f32.pop %v351
    %v360 = verf.f32.pop %v352
    %v361 = verf.f32.pop %v353
    %v362 = vadd.f32 %v354, 1.0
    %v363 = vadd.f32 %v355, 1.0
    %v364 = vadd.f32 %v356, 1.0
    %v365 = vadd.f32 %v357, 1.0
    %v366 = vadd.f32 %v358, 1.0
    %v367 = vadd.f32 %v359, 1.0
    %v368 = vadd.f32 %v360, 1.0
    %v369 = vadd.f32 %v361, 1.0
    %v370 = vmul.f32 %v338, %v362
    %v371 = vmul.f32 %v339, %v363
    %v372 = vmul.f32 %v340, %v364
    %v373 = vmul.f32 %v341, %v365
    %v374 = vmul.f32 %v342, %v366
    %v375 = vmul.f32 %v343, %v367
    %v376 = vmul.f32 %v344, %v368
    %v377 = vmul.f32 %v345, %v369
    %v378 = vld [vmem:[#allocation8] sm:$0xff]
    %v379 = vld [vmem:[#allocation8 + $0x8] sm:$0xff]
    %v380 = vld [vmem:[#allocation8 + $0x10] sm:$0xff]
    %v381 = vld [vmem:[#allocation8 + $0x18] sm:$0xff]
    %v382 = vld [vmem:[#allocation8 + $0x20] sm:$0xff]
    %v383 = vld [vmem:[#allocation8 + $0x28] sm:$0xff]
    %v384 = vld [vmem:[#allocation8 + $0x30] sm:$0xff]
    %v385 = vld [vmem:[#allocation8 + $0x38] sm:$0xff]
    %v386 = vld [vmem:[#allocation8 + $0x40] sm:$0xff]
    %v387 = vld [vmem:[#allocation8 + $0x48] sm:$0xff]
    %v388 = vld [vmem:[#allocation8 + $0x50] sm:$0xff]
    %v389 = vld [vmem:[#allocation8 + $0x58] sm:$0xff]
    %v390 = vld [vmem:[#allocation8 + $0x60] sm:$0xff]
    %v391 = vld [vmem:[#allocation8 + $0x68] sm:$0xff]
    %v392 = vld [vmem:[#allocation8 + $0x70] sm:$0xff]
    %v393 = vld [vmem:[#allocation8 + $0x78] sm:$0xff]
    %v394 = vld [vmem:[#allocation8 + $0x80] sm:$0xff]
    %v395 = vld [vmem:[#allocation8 + $0x88] sm:$0xff]
    %v396 = vld [vmem:[#allocation8 + $0x90] sm:$0xff]
    %v397 = vld [vmem:[#allocation8 + $0x98] sm:$0xff]
    %v398 = vld [vmem:[#allocation8 + $0xa0] sm:$0xff]
    %v399 = vld [vmem:[#allocation8 + $0xa8] sm:$0xff]
    %v400 = vld [vmem:[#allocation8 + $0xb0] sm:$0xff]
    %v401 = vld [vmem:[#allocation8 + $0xb8] sm:$0xff]
    %v402 = vld [vmem:[#allocation8 + $0xc0] sm:$0xff]
    %v403 = vld [vmem:[#allocation8 + $0xc8] sm:$0xff]
    %v404 = vld [vmem:[#allocation8 + $0xd0] sm:$0xff]
    %v405 = vld [vmem:[#allocation8 + $0xd8] sm:$0xff]
    %v406 = vld [vmem:[#allocation8 + $0xe0] sm:$0xff]
    %v407 = vld [vmem:[#allocation8 + $0xe8] sm:$0xff]
    %v408 = vld [vmem:[#allocation8 + $0xf0] sm:$0xff]
    %v409 = vld [vmem:[#allocation8 + $0xf8] sm:$0xff]
    %v410 = vld [vmem:[#allocation8 + $0x100] sm:$0xff]
    %v411 = vld [vmem:[#allocation8 + $0x108] sm:$0xff]
    %v412 = vld [vmem:[#allocation8 + $0x110] sm:$0xff]
    %v413 = vld [vmem:[#allocation8 + $0x118] sm:$0xff]
    %v414 = vld [vmem:[#allocation8 + $0x120] sm:$0xff]
    %v415 = vld [vmem:[#allocation8 + $0x128] sm:$0xff]
    %v416 = vld [vmem:[#allocation8 + $0x130] sm:$0xff]
    %v417 = vld [vmem:[#allocation8 + $0x138] sm:$0xff]
    %v418 = vld [vmem:[#allocation8 + $0x140] sm:$0xff]
    %v419 = vld [vmem:[#allocation8 + $0x148] sm:$0xff]
    %v420 = vld [vmem:[#allocation8 + $0x150] sm:$0xff]
    %v421 = vld [vmem:[#allocation8 + $0x158] sm:$0xff]
    %v422 = vld [vmem:[#allocation8 + $0x160] sm:$0xff]
    %v423 = vld [vmem:[#allocation8 + $0x168] sm:$0xff]
    %v424 = vld [vmem:[#allocation8 + $0x170] sm:$0xff]
    %v425 = vld [vmem:[#allocation8 + $0x178] sm:$0xff]
    %v426 = vld [vmem:[#allocation8 + $0x180] sm:$0xff]
    %v427 = vld [vmem:[#allocation8 + $0x188] sm:$0xff]
    %v428 = vld [vmem:[#allocation8 + $0x190] sm:$0xff]
    %v429 = vld [vmem:[#allocation8 + $0x198] sm:$0xff]
    %v430 = vld [vmem:[#allocation8 + $0x1a0] sm:$0xff]
    %v431 = vld [vmem:[#allocation8 + $0x1a8] sm:$0xff]
    %v432 = vld [vmem:[#allocation8 + $0x1b0] sm:$0xff]
    %v433 = vld [vmem:[#allocation8 + $0x1b8] sm:$0xff]
    %v434 = vld [vmem:[#allocation8 + $0x1c0] sm:$0xff]
    %v435 = vld [vmem:[#allocation8 + $0x1c8] sm:$0xff]
    %v436 = vld [vmem:[#allocation8 + $0x1d0] sm:$0xff]
    %v437 = vld [vmem:[#allocation8 + $0x1d8] sm:$0xff]
    %v438 = vld [vmem:[#allocation8 + $0x1e0] sm:$0xff]
    %v439 = vld [vmem:[#allocation8 + $0x1e8] sm:$0xff]
    %v440 = vld [vmem:[#allocation8 + $0x1f0] sm:$0xff]
    %v441 = vld [vmem:[#allocation8 + $0x1f8] sm:$0xff]
    %v442 = vld [vmem:[#allocation8 + $0x200] sm:$0xff]
    %v443 = vld [vmem:[#allocation8 + $0x208] sm:$0xff]
    %v444 = vld [vmem:[#allocation8 + $0x210] sm:$0xff]
    %v445 = vld [vmem:[#allocation8 + $0x218] sm:$0xff]
    %v446 = vld [vmem:[#allocation8 + $0x220] sm:$0xff]
    %v447 = vld [vmem:[#allocation8 + $0x228] sm:$0xff]
    %v448 = vld [vmem:[#allocation8 + $0x230] sm:$0xff]
    %v449 = vld [vmem:[#allocation8 + $0x238] sm:$0xff]
    %v450 = vld [vmem:[#allocation8 + $0x240] sm:$0xff]
    %v451 = vld [vmem:[#allocation8 + $0x248] sm:$0xff]
    %v452 = vld [vmem:[#allocation8 + $0x250] sm:$0xff]
    %v453 = vld [vmem:[#allocation8 + $0x258] sm:$0xff]
    %v454 = vld [vmem:[#allocation8 + $0x260] sm:$0xff]
    %v455 = vld [vmem:[#allocation8 + $0x268] sm:$0xff]
    %v456 = vld [vmem:[#allocation8 + $0x270] sm:$0xff]
    %v457 = vld [vmem:[#allocation8 + $0x278] sm:$0xff]
    %v458 = vld [vmem:[#allocation8 + $0x280] sm:$0xff]
    %v459 = vld [vmem:[#allocation8 + $0x288] sm:$0xff]
    %v460 = vld [vmem:[#allocation8 + $0x290] sm:$0xff]
    %v461 = vld [vmem:[#allocation8 + $0x298] sm:$0xff]
    %v462 = vld [vmem:[#allocation8 + $0x2a0] sm:$0xff]
    %v463 = vld [vmem:[#allocation8 + $0x2a8] sm:$0xff]
    %v464 = vld [vmem:[#allocation8 + $0x2b0] sm:$0xff]
    %v465 = vld [vmem:[#allocation8 + $0x2b8] sm:$0xff]
    %v466 = vld [vmem:[#allocation8 + $0x2c0] sm:$0xff]
    %v467 = vld [vmem:[#allocation8 + $0x2c8] sm:$0xff]
    %v468 = vld [vmem:[#allocation8 + $0x2d0] sm:$0xff]
    %v469 = vld [vmem:[#allocation8 + $0x2d8] sm:$0xff]
    %v470 = vld [vmem:[#allocation8 + $0x2e0] sm:$0xff]
    %v471 = vld [vmem:[#allocation8 + $0x2e8] sm:$0xff]
    %v472 = vld [vmem:[#allocation8 + $0x2f0] sm:$0xff]
    %v473 = vld [vmem:[#allocation8 + $0x2f8] sm:$0xff]
    %v474 = vld [vmem:[#allocation8 + $0x300] sm:$0xff]
    %v475 = vld [vmem:[#allocation8 + $0x308] sm:$0xff]
    %v476 = vld [vmem:[#allocation8 + $0x310] sm:$0xff]
    %v477 = vld [vmem:[#allocation8 + $0x318] sm:$0xff]
    %v478 = vld [vmem:[#allocation8 + $0x320] sm:$0xff]
    %v479 = vld [vmem:[#allocation8 + $0x328] sm:$0xff]
    %v480 = vld [vmem:[#allocation8 + $0x330] sm:$0xff]
    %v481 = vld [vmem:[#allocation8 + $0x338] sm:$0xff]
    %v482 = vld [vmem:[#allocation8 + $0x340] sm:$0xff]
    %v483 = vld [vmem:[#allocation8 + $0x348] sm:$0xff]
    %v484 = vld [vmem:[#allocation8 + $0x350] sm:$0xff]
    %v485 = vld [vmem:[#allocation8 + $0x358] sm:$0xff]
    %v486 = vld [vmem:[#allocation8 + $0x360] sm:$0xff]
    %v487 = vld [vmem:[#allocation8 + $0x368] sm:$0xff]
    %v488 = vld [vmem:[#allocation8 + $0x370] sm:$0xff]
    %v489 = vld [vmem:[#allocation8 + $0x378] sm:$0xff]
    %v490 = vld [vmem:[#allocation8 + $0x380] sm:$0xff]
    %v491 = vld [vmem:[#allocation8 + $0x388] sm:$0xff]
    %v492 = vld [vmem:[#allocation8 + $0x390] sm:$0xff]
    %v493 = vld [vmem:[#allocation8 + $0x398] sm:$0xff]
    %v494 = vld [vmem:[#allocation8 + $0x3a0] sm:$0xff]
    %v495 = vld [vmem:[#allocation8 + $0x3a8] sm:$0xff]
    %v496 = vld [vmem:[#allocation8 + $0x3b0] sm:$0xff]
    %v497 = vld [vmem:[#allocation8 + $0x3b8] sm:$0xff]
    %v498 = vld [vmem:[#allocation8 + $0x3c0] sm:$0xff]
    %v499 = vld [vmem:[#allocation8 + $0x3c8] sm:$0xff]
    %v500 = vld [vmem:[#allocation8 + $0x3d0] sm:$0xff]
    %v501 = vld [vmem:[#allocation8 + $0x3d8] sm:$0xff]
    %v502 = vld [vmem:[#allocation8 + $0x3e0] sm:$0xff]
    %v503 = vld [vmem:[#allocation8 + $0x3e8] sm:$0xff]
    %v504 = vld [vmem:[#allocation8 + $0x3f0] sm:$0xff]
    %v505 = vld [vmem:[#allocation8 + $0x3f8] sm:$0xff]
    %v506 = vld [vmem:[#allocation10] sm:$0x3]
    %v508 = vlaneseq
    %v509 = vshrl.u32 %v508, 7
    %v510 = vsub.s32 0, %v509
    %v511 = vrot.slane %v506, %v510
    %v512 = vlaneseq
    %v513 = vshrl.u32 %v512, 7
    %v514 = vsub.s32 1, %v513
    %v515 = vrot.slane %v506, %v514
    %518 = vmatprep.subr.mxu0 %v409
    %519 = vmatpush1.msra.mxu0 %v408
    %520 = vmatprep.subr.mxu0 %v407
    %521 = vmatpush1.msra.mxu0 %v406
    %522 = vmatprep.subr.mxu0 %v405
    %523 = vmatpush1.msra.mxu0 %v404
    %524 = vmatprep.subr.mxu0 %v403
    %525 = vmatpush1.msra.mxu0 %v402
    %526 = vmatprep.subr.mxu0 %v401
    %527 = vmatpush1.msra.mxu0 %v400
    %528 = vmatprep.subr.mxu0 %v399
    %529 = vmatpush1.msra.mxu0 %v398
    %530 = vmatprep.subr.mxu0 %v397
    %531 = vmatpush1.msra.mxu0 %v396
    %532 = vmatprep.subr.mxu0 %v395
    %533 = vmatpush1.msra.mxu0 %v394
    %534 = vmatprep.subr.mxu0 %v393
    %535 = vmatpush1.msra.mxu0 %v392
    %536 = vmatprep.subr.mxu0 %v391
    %537 = vmatpush1.msra.mxu0 %v390
    %538 = vmatprep.subr.mxu0 %v389
    %539 = vmatpush1.msra.mxu0 %v388
    %540 = vmatprep.subr.mxu0 %v387
    %541 = vmatpush1.msra.mxu0 %v386
    %542 = vmatprep.subr.mxu0 %v385
    %543 = vmatpush1.msra.mxu0 %v384
    %544 = vmatprep.subr.mxu0 %v383
    %545 = vmatpush1.msra.mxu0 %v382
    %546 = vmatprep.subr.mxu0 %v381
    %547 = vmatpush1.msra.mxu0 %v380
    %548 = vmatprep.subr.mxu0 %v379
    %549 = vmatpush1.msra.mxu0 %v378
    %550 = vmatprep.subr.mxu0 %v441
    %551 = vmatpush2.msra.mxu0 %v440
    %552 = vmatprep.subr.mxu0 %v439
    %553 = vmatpush2.msra.mxu0 %v438
    %554 = vmatprep.subr.mxu0 %v437
    %555 = vmatpush2.msra.mxu0 %v436
    %556 = vmatprep.subr.mxu0 %v435
    %557 = vmatpush2.msra.mxu0 %v434
    %558 = vmatprep.subr.mxu0 %v433
    %559 = vmatpush2.msra.mxu0 %v432
    %560 = vmatprep.subr.mxu0 %v431
    %561 = vmatpush2.msra.mxu0 %v430
    %562 = vmatprep.subr.mxu0 %v429
    %563 = vmatpush2.msra.mxu0 %v428
    %564 = vmatprep.subr.mxu0 %v427
    %565 = vmatpush2.msra.mxu0 %v426
    %566 = vmatprep.subr.mxu0 %v425
    %567 = vmatpush2.msra.mxu0 %v424
    %568 = vmatprep.subr.mxu0 %v423
    %569 = vmatpush2.msra.mxu0 %v422
    %570 = vmatprep.subr.mxu0 %v421
    %571 = vmatpush2.msra.mxu0 %v420
    %572 = vmatprep.subr.mxu0 %v419
    %573 = vmatpush2.msra.mxu0 %v418
    %574 = vmatprep.subr.mxu0 %v417
    %575 = vmatpush2.msra.mxu0 %v416
    %576 = vmatprep.subr.mxu0 %v415
    %577 = vmatpush2.msra.mxu0 %v414
    %578 = vmatprep.subr.mxu0 %v413
    %579 = vmatpush2.msra.mxu0 %v412
    %580 = vmatprep.subr.mxu0 %v411
    %581 = vmatpush2.msra.mxu0 %v410
    %582 = vmatprep.mubr.f32.mxu0 %v371
    %583 = vmatmul.mubr.f32.gmra.mxu0 %v370
    %v584 = vpop.f32.mrf.mxu0
    %v585 = vadd.f32 %v511, %v584
    %v586 = vpop.f32.mrf.mxu0
    %v587 = vadd.f32 %v515, %v586
    %588 = vmatprep.mubr.f32.mxu0 %v375
    %589 = vmatmul.mubr.f32.gmra.mxu0 %v374
    %v590 = vpop.f32.mrf.mxu0
    %v591 = vadd.f32 %v511, %v590
    %v592 = vpop.f32.mrf.mxu0
    %v593 = vadd.f32 %v515, %v592
    %594 = vdwg.mxu0
    %595 = vmatprep.subr.mxu0 %v473
    %596 = vmatpush1.msra.mxu0 %v472
    %597 = vmatprep.subr.mxu0 %v471
    %598 = vmatpush1.msra.mxu0 %v470
    %599 = vmatprep.subr.mxu0 %v469
    %600 = vmatpush1.msra.mxu0 %v468
    %601 = vmatprep.subr.mxu0 %v467
    %602 = vmatpush1.msra.mxu0 %v466
    %603 = vmatprep.subr.mxu0 %v465
    %604 = vmatpush1.msra.mxu0 %v464
    %605 = vmatprep.subr.mxu0 %v463
    %606 = vmatpush1.msra.mxu0 %v462
    %607 = vmatprep.subr.mxu0 %v461
    %608 = vmatpush1.msra.mxu0 %v460
    %609 = vmatprep.subr.mxu0 %v459
    %610 = vmatpush1.msra.mxu0 %v458
    %611 = vmatprep.subr.mxu0 %v457
    %612 = vmatpush1.msra.mxu0 %v456
    %613 = vmatprep.subr.mxu0 %v455
    %614 = vmatpush1.msra.mxu0 %v454
    %615 = vmatprep.subr.mxu0 %v453
    %616 = vmatpush1.msra.mxu0 %v452
    %617 = vmatprep.subr.mxu0 %v451
    %618 = vmatpush1.msra.mxu0 %v450
    %619 = vmatprep.subr.mxu0 %v449
    %620 = vmatpush1.msra.mxu0 %v448
    %621 = vmatprep.subr.mxu0 %v447
    %622 = vmatpush1.msra.mxu0 %v446
    %623 = vmatprep.subr.mxu0 %v445
    %624 = vmatpush1.msra.mxu0 %v444
    %625 = vmatprep.subr.mxu0 %v443
    %626 = vmatpush1.msra.mxu0 %v442
    %627 = vmatprep.subr.mxu0 %v505
    %628 = vmatpush2.msra.mxu0 %v504
    %629 = vmatprep.subr.mxu0 %v503
    %630 = vmatpush2.msra.mxu0 %v502
    %631 = vmatprep.subr.mxu0 %v501
    %632 = vmatpush2.msra.mxu0 %v500
    %633 = vmatprep.subr.mxu0 %v499
    %634 = vmatpush2.msra.mxu0 %v498
    %635 = vmatprep.subr.mxu0 %v497
    %636 = vmatpush2.msra.mxu0 %v496
    %637 = vmatprep.subr.mxu0 %v495
    %638 = vmatpush2.msra.mxu0 %v494
    %639 = vmatprep.subr.mxu0 %v493
    %640 = vmatpush2.msra.mxu0 %v492
    %641 = vmatprep.subr.mxu0 %v491
    %642 = vmatpush2.msra.mxu0 %v490
    %643 = vmatprep.subr.mxu0 %v489
    %644 = vmatpush2.msra.mxu0 %v488
    %645 = vmatprep.subr.mxu0 %v487
    %646 = vmatpush2.msra.mxu0 %v486
    %647 = vmatprep.subr.mxu0 %v485
    %648 = vmatpush2.msra.mxu0 %v484
    %649 = vmatprep.subr.mxu0 %v483
    %650 = vmatpush2.msra.mxu0 %v482
    %651 = vmatprep.subr.mxu0 %v481
    %652 = vmatpush2.msra.mxu0 %v480
    %653 = vmatprep.subr.mxu0 %v479
    %654 = vmatpush2.msra.mxu0 %v478
    %655 = vmatprep.subr.mxu0 %v477
    %656 = vmatpush2.msra.mxu0 %v476
    %657 = vmatprep.subr.mxu0 %v475
    %658 = vmatpush2.msra.mxu0 %v474
    %659 = vmatprep.mubr.f32.mxu0 %v373
    %660 = vmatmul.mubr.f32.gmra.mxu0 %v372
    %v661 = vpop.f32.mrf.mxu0
    %v662 = vadd.f32 %v585, %v661
    %v663 = vpop.f32.mrf.mxu0
    %v664 = vadd.f32 %v587, %v663
    %665 = vmatprep.mubr.f32.mxu0 %v377
    %666 = vmatmul.mubr.f32.gmra.mxu0 %v376
    %v667 = vpop.f32.mrf.mxu0
    %v668 = vadd.f32 %v591, %v667
    %v669 = vpop.f32.mrf.mxu0
    %v670 = vadd.f32 %v593, %v669
    %671 = vdwg.mxu0
    %v672 = vmul.f32 %v662, 0.5
    %v673 = vmul.f32 %v664, 0.5
    %v674 = vmul.f32 %v668, 0.5
    %v675 = vmul.f32 %v670, 0.5
    %v676 = vmul.f32 %v662, 0.70710677
    %v677 = vmul.f32 %v664, 0.70710677
    %v678 = vmul.f32 %v668, 0.70710677
    %v679 = vmul.f32 %v670, 0.70710677
    %v680 = verf.f32.pop %v676
    %v681 = verf.f32.pop %v677
    %v682 = verf.f32.pop %v678
    %v683 = verf.f32.pop %v679
    %v684 = vadd.f32 %v680, 1.0
    %v685 = vadd.f32 %v681, 1.0
    %v686 = vadd.f32 %v682, 1.0
    %v687 = vadd.f32 %v683, 1.0
    %v688 = vmul.f32 %v672, %v684
    %v689 = vmul.f32 %v673, %v685
    %v690 = vmul.f32 %v674, %v686
    %v691 = vmul.f32 %v675, %v687
    %v692 = vld [vmem:[%s5] sm:$0xff]
    %v693 = vld [vmem:[%s5 + $0x8] sm:$0xff]
    %v694 = vld [vmem:[%s5 + $0x10] sm:$0xff]
    %v695 = vld [vmem:[%s5 + $0x18] sm:$0xff]
    %v696 = vld [vmem:[%s5 + $0x20] sm:$0xff]
    %v697 = vld [vmem:[%s5 + $0x28] sm:$0xff]
    %v698 = vld [vmem:[%s5 + $0x30] sm:$0xff]
    %v699 = vld [vmem:[%s5 + $0x38] sm:$0xff]
    %v700 = vld [vmem:[%s5 + $0x40] sm:$0xff]
    %v701 = vld [vmem:[%s5 + $0x48] sm:$0xff]
    %v702 = vld [vmem:[%s5 + $0x50] sm:$0xff]
    %v703 = vld [vmem:[%s5 + $0x58] sm:$0xff]
    %v704 = vld [vmem:[%s5 + $0x60] sm:$0xff]
    %v705 = vld [vmem:[%s5 + $0x68] sm:$0xff]
    %v706 = vld [vmem:[%s5 + $0x70] sm:$0xff]
    %v707 = vld [vmem:[%s5 + $0x78] sm:$0xff]
    %v708 = vld [vmem:[%s5 + $0x80] sm:$0xff]
    %v709 = vld [vmem:[%s5 + $0x88] sm:$0xff]
    %v710 = vld [vmem:[%s5 + $0x90] sm:$0xff]
    %v711 = vld [vmem:[%s5 + $0x98] sm:$0xff]
    %v712 = vld [vmem:[%s5 + $0xa0] sm:$0xff]
    %v713 = vld [vmem:[%s5 + $0xa8] sm:$0xff]
    %v714 = vld [vmem:[%s5 + $0xb0] sm:$0xff]
    %v715 = vld [vmem:[%s5 + $0xb8] sm:$0xff]
    %v716 = vld [vmem:[%s5 + $0xc0] sm:$0xff]
    %v717 = vld [vmem:[%s5 + $0xc8] sm:$0xff]
    %v718 = vld [vmem:[%s5 + $0xd0] sm:$0xff]
    %v719 = vld [vmem:[%s5 + $0xd8] sm:$0xff]
    %v720 = vld [vmem:[%s5 + $0xe0] sm:$0xff]
    %v721 = vld [vmem:[%s5 + $0xe8] sm:$0xff]
    %v722 = vld [vmem:[%s5 + $0xf0] sm:$0xff]
    %v723 = vld [vmem:[%s5 + $0xf8] sm:$0xff]
    %v724 = vld [vmem:[#allocation11] sm:$0x1]
    %v726 = vlaneseq
    %v727 = vshrl.u32 %v726, 7
    %v728 = vsub.s32 0, %v727
    %v729 = vrot.slane %v724, %v728
    %731 = vmatprep.subr.mxu0 0.0
    %732 = vmatpush1.msra.mxu0 %v707
    %733 = vmatprep.subr.mxu0 0.0
    %734 = vmatpush1.msra.mxu0 %v706
    %735 = vmatprep.subr.mxu0 0.0
    %736 = vmatpush1.msra.mxu0 %v705
    %737 = vmatprep.subr.mxu0 0.0
    %738 = vmatpush1.msra.mxu0 %v704
    %739 = vmatprep.subr.mxu0 0.0
    %740 = vmatpush1.msra.mxu0 %v703
    %741 = vmatprep.subr.mxu0 0.0
    %742 = vmatpush1.msra.mxu0 %v702
    %743 = vmatprep.subr.mxu0 0.0
    %744 = vmatpush1.msra.mxu0 %v701
    %745 = vmatprep.subr.mxu0 0.0
    %746 = vmatpush1.msra.mxu0 %v700
    %747 = vmatprep.subr.mxu0 0.0
    %748 = vmatpush1.msra.mxu0 %v699
    %749 = vmatprep.subr.mxu0 0.0
    %750 = vmatpush1.msra.mxu0 %v698
    %751 = vmatprep.subr.mxu0 0.0
    %752 = vmatpush1.msra.mxu0 %v697
    %753 = vmatprep.subr.mxu0 0.0
    %754 = vmatpush1.msra.mxu0 %v696
    %755 = vmatprep.subr.mxu0 0.0
    %756 = vmatpush1.msra.mxu0 %v695
    %757 = vmatprep.subr.mxu0 0.0
    %758 = vmatpush1.msra.mxu0 %v694
    %759 = vmatprep.subr.mxu0 0.0
    %760 = vmatpush1.msra.mxu0 %v693
    %761 = vmatprep.subr.mxu0 0.0
    %762 = vmatpush1.msra.mxu0 %v692
    %763 = vmatprep.subr.mxu0 0.0
    %764 = vmatpush2.msra.mxu0 %v723
    %765 = vmatprep.subr.mxu0 0.0
    %766 = vmatpush2.msra.mxu0 %v722
    %767 = vmatprep.subr.mxu0 0.0
    %768 = vmatpush2.msra.mxu0 %v721
    %769 = vmatprep.subr.mxu0 0.0
    %770 = vmatpush2.msra.mxu0 %v720
    %771 = vmatprep.subr.mxu0 0.0
    %772 = vmatpush2.msra.mxu0 %v719
    %773 = vmatprep.subr.mxu0 0.0
    %774 = vmatpush2.msra.mxu0 %v718
    %775 = vmatprep.subr.mxu0 0.0
    %776 = vmatpush2.msra.mxu0 %v717
    %777 = vmatprep.subr.mxu0 0.0
    %778 = vmatpush2.msra.mxu0 %v716
    %779 = vmatprep.subr.mxu0 0.0
    %780 = vmatpush2.msra.mxu0 %v715
    %781 = vmatprep.subr.mxu0 0.0
    %782 = vmatpush2.msra.mxu0 %v714
    %783 = vmatprep.subr.mxu0 0.0
    %784 = vmatpush2.msra.mxu0 %v713
    %785 = vmatprep.subr.mxu0 0.0
    %786 = vmatpush2.msra.mxu0 %v712
    %787 = vmatprep.subr.mxu0 0.0
    %788 = vmatpush2.msra.mxu0 %v711
    %789 = vmatprep.subr.mxu0 0.0
    %790 = vmatpush2.msra.mxu0 %v710
    %791 = vmatprep.subr.mxu0 0.0
    %792 = vmatpush2.msra.mxu0 %v709
    %793 = vmatprep.subr.mxu0 0.0
    %794 = vmatpush2.msra.mxu0 %v708
    %795 = vmatprep.mubr.f32.mxu0 %v689
    %796 = vmatmul.mubr.f32.gmra.mxu0 %v688
    %v797 = vpop.f32.mrf.mxu0
    %v798 = vadd.f32 %v729, %v797
    %v799 = vpop.f32.mrf.mxu0
    %800 = vmatprep.mubr.f32.mxu0 %v691
    %801 = vmatmul.mubr.f32.gmra.mxu0 %v690
    %v802 = vpop.f32.mrf.mxu0
    %v803 = vadd.f32 %v729, %v802
    %v804 = vpop.f32.mrf.mxu0
    %805 = vdwg.mxu0
    %v806 = vmul.f32 %v798, 0.5
    %v807 = vmul.f32 %v803, 0.5
    %v808 = vmul.f32 %v798, 0.70710677
    %v809 = vmul.f32 %v803, 0.70710677
    %v810 = verf.f32.pop %v808
    %v811 = verf.f32.pop %v809
    %v812 = vadd.f32 %v810, 1.0
    %v813 = vadd.f32 %v811, 1.0
    %v814 = vmul.f32 %v806, %v812
    %v815 = vmul.f32 %v807, %v813
    %v816 = vld [vmem:[%s7] sm:$0xff]
    %v817 = vld [vmem:[%s7 + $0x8] sm:$0xff]
    %v818 = vld [vmem:[%s7 + $0x10] sm:$0xff]
    %v819 = vld [vmem:[%s7 + $0x18] sm:$0xff]
    %v820 = vld [vmem:[%s7 + $0x20] sm:$0xff]
    %v821 = vld [vmem:[%s7 + $0x28] sm:$0xff]
    %v822 = vld [vmem:[%s7 + $0x30] sm:$0xff]
    %v823 = vld [vmem:[%s7 + $0x38] sm:$0xff]
    %v824 = vld [vmem:[%s7 + $0x40] sm:$0xff]
    %v825 = vld [vmem:[%s7 + $0x48] sm:$0xff]
    %v826 = vld [vmem:[%s7 + $0x50] sm:$0xff]
    %v827 = vld [vmem:[%s7 + $0x58] sm:$0xff]
    %v828 = vld [vmem:[%s7 + $0x60] sm:$0xff]
    %v829 = vld [vmem:[%s7 + $0x68] sm:$0xff]
    %v830 = vld [vmem:[%s7 + $0x70] sm:$0xff]
    %v831 = vld [vmem:[%s7 + $0x78] sm:$0xff]
    %v832 = vld [vmem:[#allocation13] sm:$0x1]
    %v834 = vlaneseq
    %v835 = vshrl.u32 %v834, 7
    %v836 = vsub.s32 0, %v835
    %v837 = vrot.slane %v832, %v836
    %839 = vmatprep.subr.mxu0 0.0
    %840 = vmatpush1.msra.mxu0 %v831
    %841 = vmatprep.subr.mxu0 0.0
    %842 = vmatpush1.msra.mxu0 %v830
    %843 = vmatprep.subr.mxu0 0.0
    %844 = vmatpush1.msra.mxu0 %v829
    %845 = vmatprep.subr.mxu0 0.0
    %846 = vmatpush1.msra.mxu0 %v828
    %847 = vmatprep.subr.mxu0 0.0
    %848 = vmatpush1.msra.mxu0 %v827
    %849 = vmatprep.subr.mxu0 0.0
    %850 = vmatpush1.msra.mxu0 %v826
    %851 = vmatprep.subr.mxu0 0.0
    %852 = vmatpush1.msra.mxu0 %v825
    %853 = vmatprep.subr.mxu0 0.0
    %854 = vmatpush1.msra.mxu0 %v824
    %855 = vmatprep.subr.mxu0 0.0
    %856 = vmatpush1.msra.mxu0 %v823
    %857 = vmatprep.subr.mxu0 0.0
    %858 = vmatpush1.msra.mxu0 %v822
    %859 = vmatprep.subr.mxu0 0.0
    %860 = vmatpush1.msra.mxu0 %v821
    %861 = vmatprep.subr.mxu0 0.0
    %862 = vmatpush1.msra.mxu0 %v820
    %863 = vmatprep.subr.mxu0 0.0
    %864 = vmatpush1.msra.mxu0 %v819
    %865 = vmatprep.subr.mxu0 0.0
    %866 = vmatpush1.msra.mxu0 %v818
    %867 = vmatprep.subr.mxu0 0.0
    %868 = vmatpush1.msra.mxu0 %v817
    %869 = vmatprep.subr.mxu0 0.0
    %870 = vmatpush1.msra.mxu0 %v816
    %871 = vmatprep.subr.mxu0 0.0
    %872 = vmatpush2.msra.mxu0 0.0
    %873 = vmatprep.subr.mxu0 0.0
    %874 = vmatpush2.msra.mxu0 0.0
    %875 = vmatprep.subr.mxu0 0.0
    %876 = vmatpush2.msra.mxu0 0.0
    %877 = vmatprep.subr.mxu0 0.0
    %878 = vmatpush2.msra.mxu0 0.0
    %879 = vmatprep.subr.mxu0 0.0
    %880 = vmatpush2.msra.mxu0 0.0
    %881 = vmatprep.subr.mxu0 0.0
    %882 = vmatpush2.msra.mxu0 0.0
    %883 = vmatprep.subr.mxu0 0.0
    %884 = vmatpush2.msra.mxu0 0.0
    %885 = vmatprep.subr.mxu0 0.0
    %886 = vmatpush2.msra.mxu0 0.0
    %887 = vmatprep.subr.mxu0 0.0
    %888 = vmatpush2.msra.mxu0 0.0
    %889 = vmatprep.subr.mxu0 0.0
    %890 = vmatpush2.msra.mxu0 0.0
    %891 = vmatprep.subr.mxu0 0.0
    %892 = vmatpush2.msra.mxu0 0.0
    %893 = vmatprep.subr.mxu0 0.0
    %894 = vmatpush2.msra.mxu0 0.0
    %895 = vmatprep.subr.mxu0 0.0
    %896 = vmatpush2.msra.mxu0 0.0
    %897 = vmatprep.subr.mxu0 0.0
    %898 = vmatpush2.msra.mxu0 0.0
    %899 = vmatprep.subr.mxu0 0.0
    %900 = vmatpush2.msra.mxu0 0.0
    %901 = vmatprep.subr.mxu0 0.0
    %902 = vmatpush2.msra.mxu0 0.0
    %903 = vmatprep.mubr.f32.mxu0 0.0
    %904 = vmatmul.mubr.f32.gmra.mxu0 %v814
    %v905 = vpop.f32.mrf.mxu0
    %v906 = vadd.f32 %v837, %v905
    %v907 = vpop.f32.mrf.mxu0
    %908 = vmatprep.mubr.f32.mxu0 0.0
    %909 = vmatmul.mubr.f32.gmra.mxu0 %v815
    %v910 = vpop.f32.mrf.mxu0
    %v911 = vadd.f32 %v837, %v910
    %v912 = vpop.f32.mrf.mxu0
    %913 = vdwg.mxu0
    %v914 = vmul.f32 %v906, 0.5
    %v915 = vmul.f32 %v911, 0.5
    %v916 = vmul.f32 %v906, 0.70710677
    %v917 = vmul.f32 %v911, 0.70710677
    %v918 = verf.f32.pop %v916
    %v919 = verf.f32.pop %v917
    %v920 = vadd.f32 %v918, 1.0
    %v921 = vadd.f32 %v919, 1.0
    %v922 = vmul.f32 %v914, %v920
    %v923 = vmul.f32 %v915, %v921
    %v924 = vld [vmem:[%s9] sm:$0xff]
    %v925 = vld [vmem:[%s9 + $0x8] sm:$0xff]
    %v926 = vld [vmem:[%s9 + $0x10] sm:$0xff]
    %v927 = vld [vmem:[%s9 + $0x18] sm:$0xff]
    %v928 = vld [vmem:[%s9 + $0x20] sm:$0xff]
    %v929 = vld [vmem:[%s9 + $0x28] sm:$0xff]
    %v930 = vld [vmem:[%s9 + $0x30] sm:$0xff]
    %v931 = vld [vmem:[%s9 + $0x38] sm:$0xff]
    %v932 = vld [vmem:[%s10] sm:$0x1]
    %v934 = vlaneseq
    %v935 = vshrl.u32 %v934, 7
    %v936 = vsub.s32 0, %v935
    %v937 = vrot.slane %v932, %v936
    %vm939 = vcmask 523264
    %v941 = vsel %vm939, %v922, 0
    %v944 = vsel %vm939, %v923, 0
    %946 = vmatprep.subr.mxu0 0.0
    %947 = vmatpush1.msra.mxu0 0.0
    %948 = vmatprep.subr.mxu0 0.0
    %949 = vmatpush1.msra.mxu0 0.0
    %950 = vmatprep.subr.mxu0 0.0
    %951 = vmatpush1.msra.mxu0 0.0
    %952 = vmatprep.subr.mxu0 0.0
    %953 = vmatpush1.msra.mxu0 0.0
    %954 = vmatprep.subr.mxu0 0.0
    %955 = vmatpush1.msra.mxu0 0.0
    %956 = vmatprep.subr.mxu0 0.0
    %957 = vmatpush1.msra.mxu0 0.0
    %958 = vmatprep.subr.mxu0 0.0
    %959 = vmatpush1.msra.mxu0 0.0
    %960 = vmatprep.subr.mxu0 0.0
    %961 = vmatpush1.msra.mxu0 0.0
    %962 = vmatprep.subr.mxu0 0.0
    %963 = vmatpush1.msra.mxu0 %v931
    %964 = vmatprep.subr.mxu0 0.0
    %965 = vmatpush1.msra.mxu0 %v930
    %966 = vmatprep.subr.mxu0 0.0
    %967 = vmatpush1.msra.mxu0 %v929
    %968 = vmatprep.subr.mxu0 0.0
    %969 = vmatpush1.msra.mxu0 %v928
    %970 = vmatprep.subr.mxu0 0.0
    %971 = vmatpush1.msra.mxu0 %v927
    %972 = vmatprep.subr.mxu0 0.0
    %973 = vmatpush1.msra.mxu0 %v926
    %974 = vmatprep.subr.mxu0 0.0
    %975 = vmatpush1.msra.mxu0 %v925
    %976 = vmatprep.subr.mxu0 0.0
    %977 = vmatpush1.msra.mxu0 %v924
    %978 = vmatprep.subr.mxu0 0.0
    %979 = vmatpush2.msra.mxu0 0.0
    %980 = vmatprep.subr.mxu0 0.0
    %981 = vmatpush2.msra.mxu0 0.0
    %982 = vmatprep.subr.mxu0 0.0
    %983 = vmatpush2.msra.mxu0 0.0
    %984 = vmatprep.subr.mxu0 0.0
    %985 = vmatpush2.msra.mxu0 0.0
    %986 = vmatprep.subr.mxu0 0.0
    %987 = vmatpush2.msra.mxu0 0.0
    %988 = vmatprep.subr.mxu0 0.0
    %989 = vmatpush2.msra.mxu0 0.0
    %990 = vmatprep.subr.mxu0 0.0
    %991 = vmatpush2.msra.mxu0 0.0
    %992 = vmatprep.subr.mxu0 0.0
    %993 = vmatpush2.msra.mxu0 0.0
    %994 = vmatprep.subr.mxu0 0.0
    %995 = vmatpush2.msra.mxu0 0.0
    %996 = vmatprep.subr.mxu0 0.0
    %997 = vmatpush2.msra.mxu0 0.0
    %998 = vmatprep.subr.mxu0 0.0
    %999 = vmatpush2.msra.mxu0 0.0
    %1000 = vmatprep.subr.mxu0 0.0
    %1001 = vmatpush2.msra.mxu0 0.0
    %1002 = vmatprep.subr.mxu0 0.0
    %1003 = vmatpush2.msra.mxu0 0.0
    %1004 = vmatprep.subr.mxu0 0.0
    %1005 = vmatpush2.msra.mxu0 0.0
    %1006 = vmatprep.subr.mxu0 0.0
    %1007 = vmatpush2.msra.mxu0 0.0
    %1008 = vmatprep.subr.mxu0 0.0
    %1009 = vmatpush2.msra.mxu0 0.0
    %1010 = vmatprep.mubr.f32.mxu0 0.0
    %1011 = vmatmul.mubr.f32.gmra.mxu0 %v941
    %v1012 = vpop.f32.mrf.mxu0
    %v1013 = vadd.f32 %v937, %v1012
    %v1014 = vpop.f32.mrf.mxu0
    %1015 = vmatprep.mubr.f32.mxu0 0.0
    %1016 = vmatmul.mubr.f32.gmra.mxu0 %v944
    %v1017 = vpop.f32.mrf.mxu0
    %v1018 = vadd.f32 %v937, %v1017
    %v1019 = vpop.f32.mrf.mxu0
    %1020 = vdwg.mxu0
    %v1021 = vmul.f32 %v1013, 0.5
    %v1022 = vmul.f32 %v1018, 0.5
    %v1023 = vmul.f32 %v1013, 0.70710677
    %v1024 = vmul.f32 %v1018, 0.70710677
    %v1025 = verf.f32.pop %v1023
    %v1026 = verf.f32.pop %v1024
    %v1027 = vadd.f32 %v1025, 1.0
    %v1028 = vadd.f32 %v1026, 1.0
    %v1029 = vmul.f32 %v1021, %v1027
    %v1030 = vmul.f32 %v1022, %v1028
    %v1031 = vld [vmem:[%s11] sm:$0xff]
    %v1032 = vld [vmem:[%s11 + $0x8] sm:$0xff]
    %v1033 = vld [vmem:[%s11 + $0x10] sm:$0xff]
    %v1034 = vld [vmem:[%s11 + $0x18] sm:$0xff]
    %v1035 = vld [vmem:[%s12] sm:$0x1]
    %v1037 = vlaneseq
    %v1038 = vshrl.u32 %v1037, 7
    %v1039 = vsub.s32 0, %v1038
    %v1040 = vrot.slane %v1035, %v1039
    %vm1042 = vcmask 261120
    %v1044 = vsel %vm1042, %v1029, 0
    %v1047 = vsel %vm1042, %v1030, 0
    %1049 = vmatprep.subr.mxu0 0.0
    %1050 = vmatpush1.msra.mxu0 0.0
    %1051 = vmatprep.subr.mxu0 0.0
    %1052 = vmatpush1.msra.mxu0 0.0
    %1053 = vmatprep.subr.mxu0 0.0
    %1054 = vmatpush1.msra.mxu0 0.0
    %1055 = vmatprep.subr.mxu0 0.0
    %1056 = vmatpush1.msra.mxu0 0.0
    %1057 = vmatprep.subr.mxu0 0.0
    %1058 = vmatpush1.msra.mxu0 0.0
    %1059 = vmatprep.subr.mxu0 0.0
    %1060 = vmatpush1.msra.mxu0 0.0
    %1061 = vmatprep.subr.mxu0 0.0
    %1062 = vmatpush1.msra.mxu0 0.0
    %1063 = vmatprep.subr.mxu0 0.0
    %1064 = vmatpush1.msra.mxu0 0.0
    %1065 = vmatprep.subr.mxu0 0.0
    %1066 = vmatpush1.msra.mxu0 0.0
    %1067 = vmatprep.subr.mxu0 0.0
    %1068 = vmatpush1.msra.mxu0 0.0
    %1069 = vmatprep.subr.mxu0 0.0
    %1070 = vmatpush1.msra.mxu0 0.0
    %1071 = vmatprep.subr.mxu0 0.0
    %1072 = vmatpush1.msra.mxu0 0.0
    %1073 = vmatprep.subr.mxu0 0.0
    %1074 = vmatpush1.msra.mxu0 %v1034
    %1075 = vmatprep.subr.mxu0 0.0
    %1076 = vmatpush1.msra.mxu0 %v1033
    %1077 = vmatprep.subr.mxu0 0.0
    %1078 = vmatpush1.msra.mxu0 %v1032
    %1079 = vmatprep.subr.mxu0 0.0
    %1080 = vmatpush1.msra.mxu0 %v1031
    %1081 = vmatprep.subr.mxu0 0.0
    %1082 = vmatpush2.msra.mxu0 0.0
    %1083 = vmatprep.subr.mxu0 0.0
    %1084 = vmatpush2.msra.mxu0 0.0
    %1085 = vmatprep.subr.mxu0 0.0
    %1086 = vmatpush2.msra.mxu0 0.0
    %1087 = vmatprep.subr.mxu0 0.0
    %1088 = vmatpush2.msra.mxu0 0.0
    %1089 = vmatprep.subr.mxu0 0.0
    %1090 = vmatpush2.msra.mxu0 0.0
    %1091 = vmatprep.subr.mxu0 0.0
    %1092 = vmatpush2.msra.mxu0 0.0
    %1093 = vmatprep.subr.mxu0 0.0
    %1094 = vmatpush2.msra.mxu0 0.0
    %1095 = vmatprep.subr.mxu0 0.0
    %1096 = vmatpush2.msra.mxu0 0.0
    %1097 = vmatprep.subr.mxu0 0.0
    %1098 = vmatpush2.msra.mxu0 0.0
    %1099 = vmatprep.subr.mxu0 0.0
    %1100 = vmatpush2.msra.mxu0 0.0
    %1101 = vmatprep.subr.mxu0 0.0
    %1102 = vmatpush2.msra.mxu0 0.0
    %1103 = vmatprep.subr.mxu0 0.0
    %1104 = vmatpush2.msra.mxu0 0.0
    %1105 = vmatprep.subr.mxu0 0.0
    %1106 = vmatpush2.msra.mxu0 0.0
    %1107 = vmatprep.subr.mxu0 0.0
    %1108 = vmatpush2.msra.mxu0 0.0
    %1109 = vmatprep.subr.mxu0 0.0
    %1110 = vmatpush2.msra.mxu0 0.0
    %1111 = vmatprep.subr.mxu0 0.0
    %1112 = vmatpush2.msra.mxu0 0.0
    %1113 = vmatprep.mubr.f32.mxu0 0.0
    %1114 = vmatmul.mubr.f32.gmra.mxu0 %v1044
    %v1115 = vpop.f32.mrf.mxu0
    %v1116 = vadd.f32 %v1040, %v1115
    %v1117 = vpop.f32.mrf.mxu0
    %1118 = vmatprep.mubr.f32.mxu0 0.0
    %1119 = vmatmul.mubr.f32.gmra.mxu0 %v1047
    %v1120 = vpop.f32.mrf.mxu0
    %v1121 = vadd.f32 %v1040, %v1120
    %v1122 = vpop.f32.mrf.mxu0
    %1123 = vdwg.mxu0
    %vm1124 = vcmask 130048
    %1125 = vst.msk [vmem:[#allocation14] sm:$0xff] %vm1124, %v1116
    %1126 = vst.msk [vmem:[#allocation14 + $0x8] sm:$0xff] %vm1124, %v1121
    // Predicated region
    $region82: #{tpu_custom_call.1} parent=1 // pred_check
      _
    $region83: #{tpu_custom_call.1} parent=1 // pred_check_branch
      %1128 = sbr.rel (0) target = $region85
    $region84: #{tpu_custom_call.1} parent=1 // pred_region
      %s1130 = ssub.s32 256, 256
      %1131 = vsyncadd [#allocation4], %s1130
      %s1132 = sshll.u32 [#allocation14], 4
      %s1133 = int_to_ptr.vmem [resolvable:$true] %s1132
      %1138 = dma.vmem_to_hbm [thread:$0]  %s1133, 256, %s13, [#allocation4], 128, 128, 8
    $region85: #{tpu_custom_call.1} parent=1 // pred_fallthru
      _
    // Predicated region
    $region86: #{tpu_custom_call.1} parent=1 // pred_check
      _
    $region87: #{tpu_custom_call.1} parent=1 // pred_check_branch
      %1140 = sbr.rel (0) target = $region89
    $region88: #{tpu_custom_call.1} parent=1 // pred_region
      %1141 = dma.done [#allocation4], 256
    $region89: #{tpu_custom_call.1} parent=1 // pred_fallthru
      _
    %1142 = vsyncpa [#allocation3], 1
    %1143 = vsyncpa [#allocation6], 1
    %1144 = vsyncpa [#allocation9], 1
    %1145 = vsyncpa [#allocation12], 1
    %1146 = vsyncpa [#allocation4], 1

</llo_original>
